<compile_context>
chip_gen: v5e
topology: v5e:2x2
jax: 0.10.0
libtpu: 0.0.40
codegen_flags: <defaults>
</compile_context>

<pallas_src>
import jax
import jax.numpy as jnp
from jax.experimental import pallas as pl
from jax.experimental.pallas import tpu as pltpu

_LANE = 128


def _round_up(x, m):
    return ((x + m - 1) // m) * m


def _round_down(x, m):
    return (x // m) * m


def _cdiv(a, b):
    return (a + b - 1) // b


# ----------------------------------------------------------------------------
# Kernels
# ----------------------------------------------------------------------------
def _make_seq_kernel(tile_t, d):
    """Natural-layout kernel: blocks are (tile_t, d), mask is row-granular."""

    def kernel(x_len_ref, x_ref, o_ref):
        b = pl.program_id(0)
        ti = pl.program_id(1)
        xl = x_len_ref[b]
        t0 = ti * tile_t

        @pl.when(t0 >= xl)                      # fully masked: never read x
        def _():
            o_ref[...] = jnp.zeros_like(o_ref)

        @pl.when(t0 + tile_t <= xl)             # fully valid: plain copy
        def _():
            o_ref[...] = x_ref[...]

        @pl.when(jnp.logical_and(t0 < xl, xl < t0 + tile_t))   # boundary
        def _():
            row = jax.lax.broadcasted_iota(jnp.int32, (tile_t, d), 0)
            mask = (t0 + row) < xl
            o_ref[...] = jnp.where(mask, x_ref[...], 0).astype(o_ref.dtype)

    return kernel


def _make_flat_kernel(tile_r, d):
    """Lane-dense flattened kernel: blocks are (tile_r, 128) of row-major
    flattened (T, D); a flat element is valid iff flat_idx < x_len[b] * d."""
    blk = tile_r * _LANE

    def kernel(x_len_ref, x_ref, o_ref):
        b = pl.program_id(0)
        ri = pl.program_id(1)
        valid = x_len_ref[b] * d
        base = ri * blk

        @pl.when(base >= valid)                 # fully masked: never read x
        def _():
            o_ref[...] = jnp.zeros_like(o_ref)

        @pl.when(base + blk <= valid)           # fully valid: plain copy
        def _():
            o_ref[...] = x_ref[...]

        @pl.when(jnp.logical_and(base < valid, valid < base + blk))  # boundary
        def _():
            row = jax.lax.broadcasted_iota(jnp.int32, (tile_r, _LANE), 0)
            lane = jax.lax.broadcasted_iota(jnp.int32, (tile_r, _LANE), 1)
            flat = base + row * _LANE + lane
            o_ref[...] = jnp.where(flat < valid, x_ref[...], 0).astype(o_ref.dtype)

    return kernel


# ----------------------------------------------------------------------------
# Wrappers
# ----------------------------------------------------------------------------
def _vmem_limit(block_nbytes):
    # in + out, double buffered, plus slack; clamped to be safe on all gens
    # (v5e default scoped 16 MiB, v7x physical 64 MiB).
    return int(min(48 << 20, max(16 << 20, 5 * block_nbytes)))


def _squeeze_natural(x, x_len, max_len, block_bytes, itemsize):
    """D % 128 == 0, T >= 8: operate directly on (B, T, D); no wrapper copies
    (no slice, no pad, no un-pad) whenever max_len >= 8."""
    b, t, d = x.shape
    out_rows = max(max_len, 8)                       # output T allocation
    tile_t = max(8, _round_down(block_bytes // (d * itemsize), 8))
    tile_t = min(tile_t, max(8, _round_down(out_rows, 8)))   # tile <= arrays
    num_tiles = _cdiv(out_rows, tile_t)              # edge block may be partial

    if num_tiles > 1:
        def in_idx(bi, ti, xl):
            # Clamp fully-masked trailing tiles to the *last valid* tile so
            # they are true revisits and their input DMA is skipped.
            last = jnp.maximum((xl[bi] - 1) // tile_t, 0)
            return (bi, jnp.minimum(ti, last), 0)
    else:
        def in_idx(bi, ti, xl):
            return (bi, ti, 0)

    def out_idx(bi, ti, xl):
        return (bi, ti, 0)

    out = pl.pallas_call(
        _make_seq_kernel(tile_t, d),
        out_shape=jax.ShapeDtypeStruct((b, out_rows, d), x.dtype),
        grid_spec=pltpu.PrefetchScalarGridSpec(
            num_scalar_prefetch=1,
            grid=(b, num_tiles),
            in_specs=[pl.BlockSpec((None, tile_t, d), in_idx)],
            out_specs=pl.BlockSpec((None, tile_t, d), out_idx),
        ),
        compiler_params=pltpu.CompilerParams(
            dimension_semantics=("parallel", "parallel"),
            vmem_limit_bytes=_vmem_limit(tile_t * d * itemsize)),
    )(x_len, x)

    if out_rows != max_len:                          # only when max_len < 8
        out = out[:, :max_len, :]
    return out


def _squeeze_flat(x, x_len, max_len, block_bytes, itemsize):
    """General path (D % 128 != 0 or tiny T): row-major flatten to lane-dense
    (rows, 128); pad only up to the next 128 / 8-row boundary."""
    b, t, d = x.shape

    flat_in = t * d
    rows_in = max(_cdiv(flat_in, _LANE), 8)
    x_flat = x.reshape(b, flat_in)                   # free (layout-preserving)
    pad_in = rows_in * _LANE - flat_in
    if pad_in:                                       # <=127 elems (or tiny x)
        x_flat = jnp.pad(x_flat, ((0, 0), (0, pad_in)))
    x3 = x_flat.reshape(b, rows_in, _LANE)

    flat_out = max_len * d
    rows_out = max(_cdiv(flat_out, _LANE), 8)
    tile_r = max(8, _round_down(block_bytes // (_LANE * itemsize), 8))
    tile_r = min(tile_r, max(8, _round_down(rows_out, 8)))
    num_tiles = _cdiv(rows_out, tile_r)
    blk = tile_r * _LANE

    if num_tiles > 1:
        def in_idx(bi, ri, xl):
            last = jnp.maximum((xl[bi] * d - 1) // blk, 0)
            return (bi, jnp.minimum(ri, last), 0)
    else:
        def in_idx(bi, ri, xl):
            return (bi, ri, 0)

    def out_idx(bi, ri, xl):
        return (bi, ri, 0)

    out3 = pl.pallas_call(
        _make_flat_kernel(tile_r, d),
        out_shape=jax.ShapeDtypeStruct((b, rows_out, _LANE), x.dtype),
        grid_spec=pltpu.PrefetchScalarGridSpec(
            num_scalar_prefetch=1,
            grid=(b, num_tiles),
            in_specs=[pl.BlockSpec((None, tile_r, _LANE), in_idx)],
            out_specs=pl.BlockSpec((None, tile_r, _LANE), out_idx),
        ),
        compiler_params=pltpu.CompilerParams(
            dimension_semantics=("parallel", "parallel"),
            vmem_limit_bytes=_vmem_limit(blk * itemsize)),
    )(x_len, x3)

    out_flat = out3.reshape(b, rows_out * _LANE)
    if rows_out * _LANE != flat_out:
        out_flat = out_flat[:, :flat_out]
    return out_flat.reshape(b, max_len, d)


def squeeze_embedding(x, x_len, *, max_len=None, block_bytes=2 * 1024 * 1024):
    """x: (B, T, D) batch-first embeddings; x_len: (B,) valid lengths.

    max_len: static Python int (longest sequence in the batch); defaults to T.
    block_bytes: approximate per-block VMEM footprint (2 MiB default is safe
    on v5e/v6e/v7x; 4-8 MiB recommended on v7x for large inputs).
    Jittable via jax.jit(..., static_argnames=("max_len", "block_bytes")).
    """
    b, t, d = x.shape
    if max_len is None:
        max_len = t
    max_len = int(min(int(max_len), t))
    if max_len <= 0:                                 # degenerate batch guard
        return jnp.zeros((b, 0, d), x.dtype)
    if t * d >= 2 ** 31:
        raise ValueError("T*D exceeds int32 flat-index range used in-kernel")

    x_len = x_len.astype(jnp.int32)
    itemsize = jnp.dtype(x.dtype).itemsize

    if d % _LANE == 0 and t >= 8:
        return _squeeze_natural(x, x_len, max_len, block_bytes, itemsize)
    return _squeeze_flat(x, x_len, max_len, block_bytes, itemsize)


# ----------------------------------------------------------------------------
# Tests
# ----------------------------------------------------------------------------
if __name__ == "__main__":
    key = jax.random.PRNGKey(0)
    fn = jax.jit(squeeze_embedding, static_argnames=("max_len", "block_bytes"))

    def ref_fn(x, x_len, max_len):
        t_idx = jnp.arange(max_len)[None, :, None]
        return jnp.where(t_idx < x_len[:, None, None], x[:, :max_len, :], 0.0)

    k1, k2, k3 = jax.random.split(key, 3)

    # Test 1: D not a multiple of 128 -> lane-dense flattened path.
    B, T, D = 2, 8, 32
    x = jax.random.normal(k1, (B, T, D), dtype=jnp.float32)
    x_len = jnp.array([5, 3], dtype=jnp.int32)
    out = jax.block_until_ready(fn(x, x_len, max_len=5))
    assert out.shape == (B, 5, D)
    assert jnp.allclose(out, ref_fn(x, x_len, 5))

    # Test 2: D multiple of 128 -> natural path with many row tiles; exercises
    # the fully-valid copy, boundary mask, and fully-masked DMA-skip branches.
    B2, T2, D2 = 3, 64, 128
    x2 = jax.random.normal(k2, (B2, T2, D2), dtype=jnp.float32)
    x_len2 = jnp.array([10, 64, 1], dtype=jnp.int32)
    out2 = jax.block_until_ready(
        fn(x2, x_len2, max_len=64, block_bytes=8 * 128 * 4))   # 8-row tiles
    assert out2.shape == (B2, 64, D2)
    assert jnp.allclose(out2, ref_fn(x2, x_len2, 64))

    # Test 3: natural path, max_len < T and not a multiple of 8 -> partial
    # trailing blocks on input and output, zero wrapper-side copies.
    B3, T3, D3 = 2, 20, 128
    x3 = jax.random.normal(k3, (B3, T3, D3), dtype=jnp.float32)
    x_len3 = jnp.array([13, 7], dtype=jnp.int32)
    out3 = jax.block_until_ready(
        fn(x3, x_len3, max_len=13, block_bytes=8 * 128 * 4))
    assert out3.shape == (B3, 13, D3)
    assert jnp.allclose(out3, ref_fn(x3, x_len3, 13))

    print("KERNEL_OK")
</pallas_src>

<mosaic_0001>
module attributes {stable_mosaic.version = 11 : i64} {
  func.func @kernel(%arg0: i32, %arg1: i32, %arg2: memref<2xi32, #tpu.memory_space<smem>>, %arg3: memref<1x8x128xf32, #tpu.memory_space<vmem>>, %arg4: memref<1x8x128xf32, #tpu.memory_space<vmem>>) attributes {dimension_semantics = [#tpu.dimension_semantics<parallel>, #tpu.dimension_semantics<parallel>], iteration_bounds = array<i64: 2, 1>, scalar_prefetch = 1 : i64, scratch_operands = 0 : i64, tpu.core_type = #tpu.core_type<tc>, window_params = [{transform_indices = @transform_0, window_bounds = array<i64: 1, 8, 128>}, {transform_indices = @transform_1, window_bounds = array<i64: 1, 8, 128>}]} {
    %0 = arith.index_cast %arg0 : i32 to index
    %1 = memref.load %arg2[%0] : memref<2xi32, #tpu.memory_space<smem>>
    %c32_i32 = arith.constant 32 : i32
    %2 = arith.muli %1, %c32_i32 : i32
    %c1024_i32 = arith.constant 1024 : i32
    %3 = arith.muli %arg1, %c1024_i32 : i32
    %4 = arith.cmpi sge, %3, %2 : i32
    %5 = arith.extui %4 : i1 to i32
    %c0_i32 = arith.constant 0 : i32
    %6 = arith.cmpi ne, %5, %c0_i32 : i32
    scf.if %6 {
      %cst = arith.constant 0.000000e+00 : f32
      %17 = vector.broadcast %cst : f32 to vector<8x128xf32>
      %c0 = arith.constant 0 : index
      %c0_4 = arith.constant 0 : index
      %c0_5 = arith.constant 0 : index
      %18 = vector.load %arg4[%c0, %c0_4, %c0_5] : memref<1x8x128xf32, #tpu.memory_space<vmem>>, vector<1x8x128xf32>
      %19 = vector.shape_cast %18 : vector<1x8x128xf32> to vector<8x128xf32>
      %20 = vector.shape_cast %17 : vector<8x128xf32> to vector<1x8x128xf32>
      tpu.vector_store %arg4[%c0, %c0_4, %c0_5], %20 {strides = array<i32>} : memref<1x8x128xf32, #tpu.memory_space<vmem>>, vector<1x8x128xf32>,
    } else {
    }
    %c1024_i32_0 = arith.constant 1024 : i32
    %7 = arith.addi %3, %c1024_i32_0 : i32
    %8 = arith.cmpi sle, %7, %2 : i32
    %9 = arith.extui %8 : i1 to i32
    %c0_i32_1 = arith.constant 0 : i32
    %10 = arith.cmpi ne, %9, %c0_i32_1 : i32
    scf.if %10 {
      %c0 = arith.constant 0 : index
      %c0_4 = arith.constant 0 : index
      %c0_5 = arith.constant 0 : index
      %17 = vector.load %arg3[%c0, %c0_4, %c0_5] : memref<1x8x128xf32, #tpu.memory_space<vmem>>, vector<1x8x128xf32>
      %18 = vector.shape_cast %17 : vector<1x8x128xf32> to vector<8x128xf32>
      %c0_6 = arith.constant 0 : index
      %c0_7 = arith.constant 0 : index
      %c0_8 = arith.constant 0 : index
      %19 = vector.load %arg4[%c0_6, %c0_7, %c0_8] : memref<1x8x128xf32, #tpu.memory_space<vmem>>, vector<1x8x128xf32>
      %20 = vector.shape_cast %19 : vector<1x8x128xf32> to vector<8x128xf32>
      %21 = vector.shape_cast %18 : vector<8x128xf32> to vector<1x8x128xf32>
      tpu.vector_store %arg4[%c0_6, %c0_7, %c0_8], %21 {strides = array<i32>} : memref<1x8x128xf32, #tpu.memory_space<vmem>>, vector<1x8x128xf32>,
    } else {
    }
    %11 = arith.cmpi slt, %3, %2 : i32
    %c1024_i32_2 = arith.constant 1024 : i32
    %12 = arith.addi %3, %c1024_i32_2 : i32
    %13 = arith.cmpi slt, %2, %12 : i32
    %14 = arith.andi %11, %13 : i1
    %15 = arith.extui %14 : i1 to i32
    %c0_i32_3 = arith.constant 0 : i32
    %16 = arith.cmpi ne, %15, %c0_i32_3 : i32
    scf.if %16 {
      %17 = tpu.iota {dimensions = array<i32: 0>} : vector<8x128xi32>
      %18 = tpu.iota {dimensions = array<i32: 1>} : vector<8x128xi32>
      %c128_i32 = arith.constant 128 : i32
      %19 = vector.broadcast %c128_i32 : i32 to vector<8x128xi32>
      %20 = arith.muli %17, %19 : vector<8x128xi32>
      %21 = vector.broadcast %3 : i32 to vector<8x128xi32>
      %22 = arith.addi %21, %20 : vector<8x128xi32>
      %23 = arith.addi %22, %18 : vector<8x128xi32>
      %24 = vector.broadcast %2 : i32 to vector<8x128xi32>
      %25 = arith.cmpi slt, %23, %24 : vector<8x128xi32>
      %c0 = arith.constant 0 : index
      %c0_4 = arith.constant 0 : index
      %c0_5 = arith.constant 0 : index
      %26 = vector.load %arg3[%c0, %c0_4, %c0_5] : memref<1x8x128xf32, #tpu.memory_space<vmem>>, vector<1x8x128xf32>
      %27 = vector.shape_cast %26 : vector<1x8x128xf32> to vector<8x128xf32>
      %c0_i32_6 = arith.constant 0 : i32
      %28 = arith.sitofp %c0_i32_6 : i32 to f32
      %29 = vector.broadcast %28 : f32 to vector<8x128xf32>
      %30 = arith.select %25, %27, %29 : vector<8x128xi1>, vector<8x128xf32>
      %c0_7 = arith.constant 0 : index
      %c0_8 = arith.constant 0 : index
      %c0_9 = arith.constant 0 : index
      %31 = vector.load %arg4[%c0_7, %c0_8, %c0_9] : memref<1x8x128xf32, #tpu.memory_space<vmem>>, vector<1x8x128xf32>
      %32 = vector.shape_cast %31 : vector<1x8x128xf32> to vector<8x128xf32>
      %33 = vector.shape_cast %30 : vector<8x128xf32> to vector<1x8x128xf32>
      tpu.vector_store %arg4[%c0_7, %c0_8, %c0_9], %33 {strides = array<i32>} : memref<1x8x128xf32, #tpu.memory_space<vmem>>, vector<1x8x128xf32>,
    } else {
    }
    return
  }
  func.func @transform_0(%arg0: i32, %arg1: i32, %arg2: memref<2xi32, #tpu.memory_space<smem>>) -> (i32, i32, i32) {
    %c0_i32 = arith.constant 0 : i32
    %c0_i32_0 = arith.constant 0 : i32
    return %arg0, %arg1, %c0_i32 : i32, i32, i32
  }
  func.func @transform_1(%arg0: i32, %arg1: i32, %arg2: memref<2xi32, #tpu.memory_space<smem>>) -> (i32, i32, i32) {
    %c0_i32 = arith.constant 0 : i32
    %c0_i32_0 = arith.constant 0 : i32
    return %arg0, %arg1, %c0_i32 : i32, i32, i32
  }
}

</mosaic_0001>

<llo_original>
// kernel: squeeze_embedding.1
$region0: #{squeeze_embedding.1}
  #allocation0 [shape = 'u32[]', space=smem, size = 0x4, offset = 0x4, fixed_abs, tag = 'smem constant byte address 0x4 - core index']
  #allocation1 [shape = 'u32[72,128]{1,0:T(1,128)}', space=vmem, size = 0x9000, scoped, tag = 'internal scratch']
  #allocation2 [shape = 's32[1]{0}', space=sflag, size = 0x4, scoped, tag = 'scoped memory for squeeze_embedding.1']
  #allocation3 [shape = 'u8[512]{0}', space=smem, size = 0x200, scoped, tag = 'prefetched SMEM operand 0']
  %s0 = inlined_call_operand.vmem [shape: s32[2], index: 0, kind: input, shape index: {}]
  %s1 = inlined_call_operand.vmem [shape: f32[2,8,128], index: 1, kind: input, shape index: {}]
  %s2 = inlined_call_operand.vmem [shape: f32[2,8,128], index: 2, kind: output, shape index: {}]
  %s3 = sld [smem:[#allocation0]]
  $region49: #{squeeze_embedding.1} parent=0
    _
  %s5 = ssub.s32 1, %s3
  %s6 = scalar_select 0, %s5, %s3
  %s8 = sshll.u32 %s0, 4
  %s9 = int_to_ptr.vmem [resolvable:$true] %s8
  %11 = dma.vmem_to_smem %s9, 16, [#allocation3], [#allocation2]
  %13 = dma.done [#allocation2], 16
  %14 = sfence
  loop: start=0, step=1, limit=4
  $region2: #{squeeze_embedding.1} parent=0 // loop_pre_header
    _
  $region3: #{squeeze_embedding.1} parent=0 // loop_header
    %s16 = sphi 0, %s20
    %p17 = scmp.ge.s32.totalorder %s16, 4
    %s23 = sphi 0, %s35
    %s24 = sphi 0, %s31
    %s25 = sphi 0, %s23
    %s26 = sphi 0, %s24
    %s27 = sphi 0, %s25
    %s28 = sphi 0, %s26
    %s40 = sphi 0, %s42
    %s43 = sphi 0, %s40
    %s44 = sphi 0, %s43
    %s60 = sphi 0, %s44
    %s68 = sphi 0, %s70
    %s71 = sphi 0, %s68
    %s72 = sphi 0, %s71
    %s88 = sphi 0, %s72
  $region4: #{squeeze_embedding.1} parent=0 // loop_header_branch
    %19 = sbr.rel (%p17) target = $region8
  $region5: #{squeeze_embedding.1} parent=0 // loop_body
    %s21 = ssub.s32 %s16, 1
    %s22 = ssub.s32 %s16, 2
    %s29 = sadd.s32 1, %s24
    %p30 = scmp.ge.s32.totalorder %s29, 1
    %s31 = scalar_select %p30, 0, %s29
    %s32 = sadd.s32 1, %s23
    %s33 = scalar_select %p30, %s32, %s23
    %p34 = scmp.ge.s32.totalorder %s33, 2
    %s35 = scalar_select %p34, 0, %s33
    %s36 = ssub.s32 %s23, %s35
    %s37 = ssub.s32 %s24, %s31
    %s38 = sor.u32 %s36, %s37
    %p39 = scmp.eq.s32.totalorder %s38, 0
    %s41 = sadd.s32 %s40, 1
    %s42 = scalar_select %p39, %s40, %s41
    %p45 = pneg %p39
    %p46 = scmp.eq.s32.totalorder %s16, 1
    %p47 = por %p45, %p46
    %p48 = scmp.ne.s32.totalorder %s40, %s43
    %p49 = scmp.eq.s32.totalorder %s16, 0
    %p50 = por %p48, %p49
    %p51 = scmp.ne.s32.totalorder %s40, %s43
    %p52 = scmp.eq.s32.totalorder %s21, 1
    %p53 = por %p51, %p52
    %p54 = scmp.ne.s32.totalorder %s43, %s44
    %p55 = scmp.eq.s32.totalorder %s21, 0
    %p56 = por %p54, %p55
    %p57 = scmp.ne.s32.totalorder %s43, %s44
    %p58 = scmp.eq.s32.totalorder %s22, 1
    %p59 = por %p57, %p58
    %p61 = scmp.ne.s32.totalorder %s44, %s60
    %p62 = scmp.eq.s32.totalorder %s22, 0
    %p63 = por %p61, %p62
    %s64 = ssub.s32 %s23, %s35
    %s65 = ssub.s32 %s24, %s31
    %s66 = sor.u32 %s64, %s65
    %p67 = scmp.eq.s32.totalorder %s66, 0
    %s69 = sadd.s32 %s68, 1
    %s70 = scalar_select %p67, %s68, %s69
    %p73 = pneg %p67
    %p74 = scmp.eq.s32.totalorder %s16, 1
    %p75 = por %p73, %p74
    %p76 = scmp.ne.s32.totalorder %s68, %s71
    %p77 = scmp.eq.s32.totalorder %s16, 0
    %p78 = por %p76, %p77
    %p79 = scmp.ne.s32.totalorder %s68, %s71
    %p80 = scmp.eq.s32.totalorder %s21, 1
    %p81 = por %p79, %p80
    %p82 = scmp.ne.s32.totalorder %s71, %s72
    %p83 = scmp.eq.s32.totalorder %s21, 0
    %p84 = por %p82, %p83
    %p85 = scmp.ne.s32.totalorder %s71, %s72
    %p86 = scmp.eq.s32.totalorder %s22, 1
    %p87 = por %p85, %p86
    %p89 = scmp.ne.s32.totalorder %s72, %s88
    %p90 = scmp.eq.s32.totalorder %s22, 0
    %p91 = por %p89, %p90
    %p92 = scmp.le.s32.totalorder 1, %s16
    %p93 = scmp.lt.s32.totalorder %s16, 3
    %p94 = pnand %p92, %p93
    %p95 = pneg %p94
    // Predicated region
    $region9: #{squeeze_embedding.1} parent=5 // pred_check
      _
    $region10: #{squeeze_embedding.1} parent=5 // pred_check_branch
      %97 = sbr.rel (%p94) target = $region12
    $region11: #{squeeze_embedding.1} parent=5 // pred_region
      %s98 = ssub.s32 %s16, 1
    $region12: #{squeeze_embedding.1} parent=5 // pred_fallthru
      _
    %p99 = scmp.lt.s32.totalorder %s16, 2
    // Predicated region
    $region13: #{squeeze_embedding.1} parent=5 // pred_check
      %p100 = pneg %p99
    $region14: #{squeeze_embedding.1} parent=5 // pred_check_branch
      %102 = sbr.rel (%p100) target = $region16
    $region15: #{squeeze_embedding.1} parent=5 // pred_region
      // Predicated region
      $region17: #{squeeze_embedding.1} parent=15 // pred_check
        %p103 = pneg %p50
      $region18: #{squeeze_embedding.1} parent=15 // pred_check_branch
        %105 = sbr.rel (%p103) target = $region20
      $region19: #{squeeze_embedding.1} parent=15 // pred_region
        %p106 = scmp.lt.s32.totalorder %s23, 1
        %s107 = scalar_select %p106, %s23, 1
        %p108 = scmp.lt.s32.totalorder %s24, 0
        %s109 = scalar_select %p108, %s24, 0
        %s110 = sadd.s32 %s109, %s107
        %s111 = smul.addr %s110, 8
        %s112 = scalar_lea.vmem %s1, %s111
      $region20: #{squeeze_embedding.1} parent=15 // pred_fallthru
        _
    $region16: #{squeeze_embedding.1} parent=5 // pred_fallthru
      _
    %p113 = scmp.le.s32.totalorder 1, %s16
    %p114 = scmp.lt.s32.totalorder %s16, 3
    %p115 = pnand %p113, %p114
    %p116 = pneg %p115
    // Predicated region
    $region21: #{squeeze_embedding.1} parent=5 // pred_check
      _
    $region22: #{squeeze_embedding.1} parent=5 // pred_check_branch
      %118 = sbr.rel (%p115) target = $region24
    $region23: #{squeeze_embedding.1} parent=5 // pred_region
      %s119 = ssub.s32 %s16, 1
      %p120 = scmp.lt.s32.totalorder %s25, 1
      %s121 = scalar_select %p120, %s25, 1
      %p122 = scmp.lt.s32.totalorder %s26, 0
      %s123 = scalar_select %p122, %s26, 0
      %s124 = sadd.s32 %s123, %s121
      %s125 = smul.addr %s124, 8
      %s126 = scalar_lea.vmem %s1, %s125
      %p127 = pneg %p56
      %p128 = pneg %p53
      %p129 = pneg %p84
      %p130 = pneg %p81
      %p131 = scmp.lt.s32.totalorder %s25, 1
      %s132 = scalar_select %p131, %s25, 1
      %p133 = scmp.lt.s32.totalorder %s26, 0
      %s134 = scalar_select %p133, %s26, 0
      %s135 = sadd.s32 %s134, %s132
      %s136 = smul.addr %s135, 8
      %s137 = scalar_lea.vmem %s2, %s136
      %p138 = scmp.lt.s32.totalorder %s25, 1
      %s139 = scalar_select %p138, %s25, 1
      %p140 = scmp.lt.s32.totalorder %s26, 0
      %s141 = scalar_select %p140, %s26, 0
      %s142 = sadd.s32 %s141, %s139
      %s143 = smul.addr %s142, 8
      %s144 = scalar_lea.vmem %s1, %s143
      %p145 = scmp.lt.s32.totalorder %s25, 1
      %s146 = scalar_select %p145, %s25, 1
      %p147 = scmp.lt.s32.totalorder %s26, 0
      %s148 = scalar_select %p147, %s26, 0
      %s149 = sadd.s32 %s148, %s146
      %s150 = smul.addr %s149, 8
      %s151 = scalar_lea.vmem %s2, %s150
      %s152 = sld [smem:[#allocation3 + %s25]]
      %s153 = smul.u32 %s152, 32
      %s154 = smul.u32 %s26, 1024
      %p155 = scmp.ge.s32.totalorder %s154, %s153
      // Predicated region
      $region25: #{squeeze_embedding.1} parent=23 // pred_check
        %p156 = pneg %p155
      $region26: #{squeeze_embedding.1} parent=23 // pred_check_branch
        %158 = sbr.rel (%p156) target = $region28
      $region27: #{squeeze_embedding.1} parent=23 // pred_region
        %159 = vst [vmem:[%s151] sm:$0xff] 0.0
      $region28: #{squeeze_embedding.1} parent=23 // pred_fallthru
        _
      %s160 = sadd.s32 %s154, 1024
      %p161 = scmp.le.s32.totalorder %s160, %s153
      // Predicated region
      $region29: #{squeeze_embedding.1} parent=23 // pred_check
        %p162 = pneg %p161
      $region30: #{squeeze_embedding.1} parent=23 // pred_check_branch
        %164 = sbr.rel (%p162) target = $region32
      $region31: #{squeeze_embedding.1} parent=23 // pred_region
        %v165 = vld [vmem:[%s144] sm:$0xff]
        %166 = vst [vmem:[%s151] sm:$0xff] %v165
      $region32: #{squeeze_embedding.1} parent=23 // pred_fallthru
        _
      %p167 = scmp.lt.s32.totalorder %s154, %s153
      %p168 = scmp.lt.s32.totalorder %s153, %s160
      %p169 = pnand %p167, %p168
      %p170 = pneg %p169
      // Predicated region
      $region33: #{squeeze_embedding.1} parent=23 // pred_check
        _
      $region34: #{squeeze_embedding.1} parent=23 // pred_check_branch
        %172 = sbr.rel (%p169) target = $region36
      $region35: #{squeeze_embedding.1} parent=23 // pred_region
        %v173 = vlaneseq
        %v174 = vshrl.u32 %v173, 7
        %v175 = vlaneseq
        %v176 = vand.u32 %v175, 127
        %v177 = vmul.u32 %v174, 128
        %v178 = vstv %s154
        %v179 = vadd.s32 %v178, %v177
        %v180 = vadd.s32 %v179, %v176
        %v181 = vstv %s153
        %vm182 = vcmp.lt.s32.totalorder %v180, %v181
        %v183 = vld [vmem:[%s144] sm:$0xff]
        %v184 = vsel %vm182, %v183, 0.0
        %185 = vst [vmem:[%s151] sm:$0xff] %v184
      $region36: #{squeeze_embedding.1} parent=23 // pred_fallthru
        _
      %p186 = scmp.lt.s32.totalorder %s25, 1
      %s187 = scalar_select %p186, %s25, 1
      %p188 = scmp.lt.s32.totalorder %s26, 0
      %s189 = scalar_select %p188, %s26, 0
      %s190 = sadd.s32 %s189, %s187
      %s191 = smul.addr %s190, 8
      %s192 = scalar_lea.vmem %s2, %s191
      // Predicated region
      $region37: #{squeeze_embedding.1} parent=23 // pred_check
        %p193 = pneg %p81
      $region38: #{squeeze_embedding.1} parent=23 // pred_check_branch
        %195 = sbr.rel (%p193) target = $region40
      $region39: #{squeeze_embedding.1} parent=23 // pred_region
        _
      $region40: #{squeeze_embedding.1} parent=23 // pred_fallthru
        _
    $region24: #{squeeze_embedding.1} parent=5 // pred_fallthru
      _
    %p196 = scmp.le.s32.totalorder 2, %s16
    // Predicated region
    $region41: #{squeeze_embedding.1} parent=5 // pred_check
      %p197 = pneg %p196
    $region42: #{squeeze_embedding.1} parent=5 // pred_check_branch
      %199 = sbr.rel (%p197) target = $region44
    $region43: #{squeeze_embedding.1} parent=5 // pred_region
      %s200 = ssub.s32 %s16, 2
      // Predicated region
      $region45: #{squeeze_embedding.1} parent=43 // pred_check
        %p201 = pneg %p87
      $region46: #{squeeze_embedding.1} parent=43 // pred_check_branch
        %203 = sbr.rel (%p201) target = $region48
      $region47: #{squeeze_embedding.1} parent=43 // pred_region
        %p204 = scmp.lt.s32.totalorder %s27, 1
        %s205 = scalar_select %p204, %s27, 1
        %p206 = scmp.lt.s32.totalorder %s28, 0
        %s207 = scalar_select %p206, %s28, 0
        %s208 = sadd.s32 %s207, %s205
        %s209 = smul.addr %s208, 8
        %s210 = scalar_lea.vmem %s2, %s209
      $region48: #{squeeze_embedding.1} parent=43 // pred_fallthru
        _
    $region44: #{squeeze_embedding.1} parent=5 // pred_fallthru
      _
  $region6: #{squeeze_embedding.1} parent=0 // loop_footer
    %s20 = sadd.s32 1, %s16
  $region7: #{squeeze_embedding.1} parent=0 // loop_footer_branch
    %15 = sbr.rel target = $region3
  $region8: #{squeeze_embedding.1} parent=0 // loop_exit
    _

</llo_original>
